<compile_context>
chip_gen: v6e
topology: v6e:2x2x1
jax: 0.10.0
libtpu: 0.0.40
codegen_flags: <defaults>
</compile_context>

<pallas_src>
import math

import jax
import jax.numpy as jnp
import numpy as np
from jax.experimental import pallas as pl
from jax.experimental.pallas import tpu as pltpu


# ----------------------------- kernels ------------------------------------- #

def _mnn_fused_kernel(xf_ref, w_ref, of_ref):
    # xf_ref: (TB, F) batch block of the flattened input (F = D1*D2)
    # w_ref : (F, F)  Kronecker-sum operator  kron(w2, I_D2) + kron(I_D1, w1)
    of_ref[...] = jnp.dot(
        xf_ref[...], w_ref[...], preferred_element_type=jnp.float32
    ).astype(of_ref.dtype)


def _mnn_block_kernel(x_ref, w2_ref, w1_ref, o_ref):
    # x_ref: (TB, D1, D2) batch block; w2_ref: (D1, D1); w1_ref: (D2, D2)
    x = x_ref[...]
    TB, D1, D2 = x.shape

    # axis -1 term: x @ w1, batch block folded into M -> (TB*D1, D2) @ (D2, D2)
    out1 = jnp.dot(
        x.reshape(TB * D1, D2), w1_ref[...], preferred_element_type=jnp.float32
    ).reshape(TB, D1, D2)

    # axis -2 term: out2[t, i, j] = sum_k x[t, k, j] * w2[k, i]
    # minor-dim swap, then fold batch block into M -> (TB*D2, D1) @ (D1, D1)
    xt = jnp.swapaxes(x, 1, 2).reshape(TB * D2, D1)
    out2 = jnp.dot(xt, w2_ref[...], preferred_element_type=jnp.float32)
    out2 = jnp.swapaxes(out2.reshape(TB, D2, D1), 1, 2)

    o_ref[...] = (out1 + out2).astype(o_ref.dtype)


# ----------------------------- wrapper helpers ------------------------------ #

def _kron(a, b):
    m, n = a.shape
    p, q = b.shape
    return (a[:, None, :, None] * b[None, :, None, :]).reshape(m * p, n * q)


def _pick_block_batch(B, row_bytes, target_tile_bytes=4 << 20, min_grid=2):
    """Pick TB so the f32 batch tile is a few MiB, with >=2 grid steps for v7x."""
    tb = max(1, target_tile_bytes // row_bytes)
    if B >= 2 * 8:
        tb = min(tb, pl.cdiv(B, min_grid))  # leave >=2 steps so v7x's 2 TCs both work
    tb = min(tb, B)
    if 8 <= tb < B:
        tb = (tb // 8) * 8                  # sublane-aligned second-to-last dim
    return int(tb)


def _vmem_limit(need_bytes, slack=4 << 20):
    # Raise the scoped-VMEM cap above the 16/32 MiB default when the
    # double-buffered tiles need it, but stay within v7x's 64 MiB physical VMEM.
    return int(min(64 << 20, max(32 << 20, need_bytes + slack)))


def mnn_forward(x, w_axis_m2, w_axis_m1, *, block_batch=None, fuse_threshold=2048):
    """Pallas MNN forward.

    x: (B, D1, D2); w_axis_m2: (D1, D1); w_axis_m1: (D2, D2).
    fuse_threshold: max D1*D2 for which the fused (D1*D2)^2 Kronecker-sum operator
    is used; above that a tiled two-matmul kernel runs instead.
    """
    B, D1, D2 = x.shape
    if w_axis_m2.shape != (D1, D1) or w_axis_m1.shape != (D2, D2):
        raise ValueError("weights must have shapes (D1, D1) and (D2, D2)")
    F = D1 * D2
    row_bytes = F * x.dtype.itemsize
    tb = block_batch if block_batch is not None else _pick_block_batch(B, row_bytes)
    tb = max(1, min(int(tb), B))
    grid_b = pl.cdiv(B, tb)
    tile_bytes = tb * row_bytes

    if F <= fuse_threshold:
        # ---- fused Kronecker-sum operator path (small D1*D2) ----
        wdt = w_axis_m2.dtype
        W = (_kron(w_axis_m2, jnp.eye(D2, dtype=wdt))
             + _kron(jnp.eye(D1, dtype=wdt), w_axis_m1))          # (F, F)
        xf = x.reshape(B, F)
        w_bytes = F * F * W.dtype.itemsize
        cost = pl.CostEstimate(
            flops=2 * B * F * F,
            transcendentals=0,
            bytes_accessed=2 * B * row_bytes + w_bytes,
        )
        out_flat = pl.pallas_call(
            _mnn_fused_kernel,
            out_shape=jax.ShapeDtypeStruct((B, F), x.dtype),
            grid_spec=pltpu.PrefetchScalarGridSpec(
                num_scalar_prefetch=0,
                grid=(grid_b,),
                in_specs=[
                    pl.BlockSpec((tb, F), lambda b: (b, 0)),
                    pl.BlockSpec((F, F), lambda b: (0, 0)),
                ],
                out_specs=pl.BlockSpec((tb, F), lambda b: (b, 0)),
            ),
            compiler_params=pltpu.CompilerParams(
                dimension_semantics=("parallel",),
                vmem_limit_bytes=_vmem_limit(2 * 2 * tile_bytes + 2 * w_bytes),
            ),
            cost_estimate=cost,
        )(xf, W)
        return out_flat.reshape(B, D1, D2)

    # ---- general tiled path (large D1*D2) ----
    w_bytes = (D1 * D1 + D2 * D2) * w_axis_m2.dtype.itemsize
    cost = pl.CostEstimate(
        flops=2 * B * D1 * D2 * (D1 + D2),
        transcendentals=0,
        bytes_accessed=2 * B * row_bytes + w_bytes,
    )
    return pl.pallas_call(
        _mnn_block_kernel,
        out_shape=jax.ShapeDtypeStruct((B, D1, D2), x.dtype),
        grid_spec=pltpu.PrefetchScalarGridSpec(
            num_scalar_prefetch=0,
            grid=(grid_b,),
            in_specs=[
                pl.BlockSpec((tb, D1, D2), lambda b: (b, 0, 0)),
                pl.BlockSpec((D1, D1), lambda b: (0, 0)),
                pl.BlockSpec((D2, D2), lambda b: (0, 0)),
            ],
            out_specs=pl.BlockSpec((tb, D1, D2), lambda b: (b, 0, 0)),
        ),
        compiler_params=pltpu.CompilerParams(
            dimension_semantics=("parallel",),
            vmem_limit_bytes=_vmem_limit(2 * 2 * tile_bytes + 2 * w_bytes),
        ),
        cost_estimate=cost,
    )(x, w_axis_m2, w_axis_m1)


# ----------------------------- reference & test ----------------------------- #

def _xavier_uniform(key, fan_in, fan_out, shape):
    bound = math.sqrt(6.0 / (fan_in + fan_out))
    return jax.random.uniform(key, shape, jnp.float32, minval=-bound, maxval=bound)


def _reference(x, w2, w1):
    # plain-JAX replica of MNN_torch.forward (parallel / shared)
    out_m2 = jnp.einsum("abc,bd->adc", x, w2)
    out_m1 = jnp.einsum("abc,cd->abd", x, w1)
    return out_m2 + out_m1


if __name__ == "__main__":
    # module shape = (D1, D2); the input adds a leading batch dim.
    B, D1, D2 = 256, 16, 32

    key = jax.random.PRNGKey(0)
    kx, k2, k1 = jax.random.split(key, 3)

    x = jax.random.normal(kx, (B, D1, D2), jnp.float32)
    # weight_-2 : shared view over axis -2 -> (D1, D1), xavier uniform
    w_axis_m2 = _xavier_uniform(k2, D1, D1, (D1, D1))
    # weight_-1 : shared view over axis -1 -> (D2, D2), xavier uniform
    w_axis_m1 = _xavier_uniform(k1, D2, D2, (D2, D2))

    ref = _reference(x, w_axis_m2, w_axis_m1)

    # Fused Kronecker-sum path (default for small D1*D2).
    out_fused = jax.block_until_ready(mnn_forward(x, w_axis_m2, w_axis_m1))
    np.testing.assert_allclose(np.asarray(out_fused), np.asarray(ref),
                               rtol=1e-4, atol=1e-4)

    # General batch-blocked two-matmul path (forced, to exercise the fallback).
    out_blk = jax.block_until_ready(
        mnn_forward(x, w_axis_m2, w_axis_m1, fuse_threshold=0))
    np.testing.assert_allclose(np.asarray(out_blk), np.asarray(ref),
                               rtol=1e-4, atol=1e-4)

    print("KERNEL_OK")
</pallas_src>

<mosaic_0001>
module attributes {stable_mosaic.version = 11 : i64} {
  func.func @_mnn_fused_kernel(%arg0: i32, %arg1: memref<128x512xf32, #tpu.memory_space<vmem>>, %arg2: memref<512x512xf32, #tpu.memory_space<vmem>>, %arg3: memref<128x512xf32, #tpu.memory_space<vmem>>) attributes {dimension_semantics = [#tpu.dimension_semantics<parallel>], iteration_bounds = array<i64: 2>, scalar_prefetch = 0 : i64, scratch_operands = 0 : i64, tpu.core_type = #tpu.core_type<tc>, window_params = [{transform_indices = @transform_0, window_bounds = array<i64: 128, 512>}, {pipeline_mode = #tpu.pipeline_mode<synchronous>, transform_indices = @transform_1, window_bounds = array<i64: 512, 512>}, {transform_indices = @transform_2, window_bounds = array<i64: 128, 512>}]} {
    %c0 = arith.constant 0 : index
    %c0_0 = arith.constant 0 : index
    %0 = vector.load %arg1[%c0, %c0_0] : memref<128x512xf32, #tpu.memory_space<vmem>>, vector<128x512xf32>
    %c0_1 = arith.constant 0 : index
    %c0_2 = arith.constant 0 : index
    %1 = vector.load %arg2[%c0_1, %c0_2] : memref<512x512xf32, #tpu.memory_space<vmem>>, vector<512x512xf32>
    %cst = arith.constant dense<0.000000e+00> : vector<128x512xf32>
    %2 = tpu.matmul %0, %1, %cst {dimension_numbers = #tpu.dot_dimension_numbers<[1], [0], [0], [1], [0, 0, 1, 1], [], []>} : vector<128x512xf32>, vector<512x512xf32>, vector<128x512xf32> -> vector<128x512xf32>
    %c0_3 = arith.constant 0 : index
    %c0_4 = arith.constant 0 : index
    %3 = vector.load %arg3[%c0_3, %c0_4] : memref<128x512xf32, #tpu.memory_space<vmem>>, vector<128x512xf32>
    tpu.vector_store %arg3[%c0_3, %c0_4], %2 {strides = array<i32>} : memref<128x512xf32, #tpu.memory_space<vmem>>, vector<128x512xf32>,
    return
  }
  func.func @transform_0(%arg0: i32) -> (i32, i32) {
    %c0_i32 = arith.constant 0 : i32
    %c0_i32_0 = arith.constant 0 : i32
    return %arg0, %c0_i32 : i32, i32
  }
  func.func @transform_1(%arg0: i32) -> (i32, i32) {
    %c0_i32 = arith.constant 0 : i32
    %c0_i32_0 = arith.constant 0 : i32
    %c0_i32_1 = arith.constant 0 : i32
    return %c0_i32, %c0_i32_0 : i32, i32
  }
  func.func @transform_2(%arg0: i32) -> (i32, i32) {
    %c0_i32 = arith.constant 0 : i32
    %c0_i32_0 = arith.constant 0 : i32
    return %arg0, %c0_i32 : i32, i32
  }
}

</mosaic_0001>

<llo_original>
// kernel: tpu_custom_call.1
$region0: #{tpu_custom_call.1}
  #allocation0 [shape = 'u32[]', space=smem, size = 0x4, offset = 0x4, fixed_abs, tag = 'smem constant byte address 0x4 - core index']
  #allocation1 [shape = 'u32[144,128]{1,0:T(1,128)}', space=vmem, size = 0x12000, scoped, tag = 'internal scratch']
  %s0 = inlined_call_operand.hbm [shape: f32[256,512], index: 0, kind: input, shape index: {}]
  %s1 = inlined_call_operand.hbm [shape: f32[512,512], index: 1, kind: input, shape index: {}]
  %s2 = inlined_call_operand.hbm [shape: f32[256,512], index: 2, kind: output, shape index: {}]
  %s3 = sld [smem:[#allocation0]]
  $region49: #{tpu_custom_call.1} parent=0
    _
  %s5 = ssub.s32 1, %s3
  %s6 = scalar_select 0, %s5, %s3
  $region1: #{tpu_custom_call.1} parent=0
    #allocation2 [shape = 'u8[524288]{0}', space=vmem, size = 0x80000, scoped, tag = 'input window, operand 0']
    #allocation3 [shape = 's32[2]{0}', space=sflag, size = 0x8, scoped, tag = 'scoped memory for tpu_custom_call.1']
    #allocation4 [shape = 's32[2]{0}', space=sflag, size = 0x8, scoped, tag = 'scoped memory for tpu_custom_call.1']
    #allocation5 [shape = 'u8[1048576]{0}', space=vmem, size = 0x100000, scoped, tag = 'input window, operand 1, single buffered']
    #allocation6 [shape = 's32[1]{0}', space=sflag, size = 0x4, scoped, tag = 'scoped memory for tpu_custom_call.1']
    #allocation7 [shape = 'u8[524288]{0}', space=vmem, size = 0x80000, scoped, tag = 'output window, operand 0']
    %7 = vsyncpa [#allocation3], 0
    %s8 = scalar_lea.sflag [#allocation3], 1
    %9 = vsyncpa %s8, 0
    %10 = vsyncpa [#allocation6], 0
    %11 = vsyncpa [#allocation4], 0
    %s12 = scalar_lea.sflag [#allocation4], 1
    %13 = vsyncpa %s12, 0
    loop: start=0, step=1, limit=4
    $region2: #{tpu_custom_call.1} parent=1 // loop_pre_header
      _
    $region3: #{tpu_custom_call.1} parent=1 // loop_header
      %s15 = sphi 0, %s19
      %p16 = scmp.ge.s32.totalorder %s15, 4
      %s25 = sphi 0, %s27
      %s28 = sphi 0, %s25
      %s29 = sphi 0, %s28
      %s45 = sphi 0, %s29
      %s49 = sphi 0, %s49
      %s51 = sphi 0, %s49
      %s52 = sphi 0, %s51
      %s66 = sphi 0, %s52
      %s72 = sphi 0, %s74
      %s75 = sphi 0, %s72
      %s76 = sphi 0, %s75
      %s92 = sphi 0, %s76
    $region4: #{tpu_custom_call.1} parent=1 // loop_header_branch
      %18 = sbr.rel (%p16) target = $region8
    $region5: #{tpu_custom_call.1} parent=1 // loop_body
      %s20 = ssub.s32 %s15, 1
      %s21 = ssub.s32 %s15, 2
      %s22 = sadd.s32 %s15, 1
      %s23 = ssub.s32 %s15, %s22
      %p24 = scmp.eq.s32.totalorder %s23, 0
      %s26 = sadd.s32 %s25, 1
      %s27 = scalar_select %p24, %s25, %s26
      %p30 = pneg %p24
      %p31 = scmp.eq.s32.totalorder %s15, 1
      %p32 = por %p30, %p31
      %p33 = scmp.ne.s32.totalorder %s25, %s28
      %p34 = scmp.eq.s32.totalorder %s15, 0
      %p35 = por %p33, %p34
      %p36 = scmp.ne.s32.totalorder %s25, %s28
      %p37 = scmp.eq.s32.totalorder %s20, 1
      %p38 = por %p36, %p37
      %p39 = scmp.ne.s32.totalorder %s28, %s29
      %p40 = scmp.eq.s32.totalorder %s20, 0
      %p41 = por %p39, %p40
      %p42 = scmp.ne.s32.totalorder %s28, %s29
      %p43 = scmp.eq.s32.totalorder %s21, 1
      %p44 = por %p42, %p43
      %p46 = scmp.ne.s32.totalorder %s29, %s45
      %p47 = scmp.eq.s32.totalorder %s21, 0
      %p48 = por %p46, %p47
      %s50 = sadd.s32 %s49, 1
      %p53 = scmp.eq.s32.totalorder %s15, 1
      %p54 = scmp.ne.s32.totalorder %s49, %s51
      %p55 = scmp.eq.s32.totalorder %s15, 0
      %p56 = por %p54, %p55
      %p57 = scmp.ne.s32.totalorder %s49, %s51
      %p58 = scmp.eq.s32.totalorder %s20, 1
      %p59 = por %p57, %p58
      %p60 = scmp.ne.s32.totalorder %s51, %s52
      %p61 = scmp.eq.s32.totalorder %s20, 0
      %p62 = por %p60, %p61
      %p63 = scmp.ne.s32.totalorder %s51, %s52
      %p64 = scmp.eq.s32.totalorder %s21, 1
      %p65 = por %p63, %p64
      %p67 = scmp.ne.s32.totalorder %s52, %s66
      %p68 = scmp.eq.s32.totalorder %s21, 0
      %p69 = por %p67, %p68
      %s70 = ssub.s32 %s15, %s22
      %p71 = scmp.eq.s32.totalorder %s70, 0
      %s73 = sadd.s32 %s72, 1
      %s74 = scalar_select %p71, %s72, %s73
      %p77 = pneg %p71
      %p78 = scmp.eq.s32.totalorder %s15, 1
      %p79 = por %p77, %p78
      %p80 = scmp.ne.s32.totalorder %s72, %s75
      %p81 = scmp.eq.s32.totalorder %s15, 0
      %p82 = por %p80, %p81
      %p83 = scmp.ne.s32.totalorder %s72, %s75
      %p84 = scmp.eq.s32.totalorder %s20, 1
      %p85 = por %p83, %p84
      %p86 = scmp.ne.s32.totalorder %s75, %s76
      %p87 = scmp.eq.s32.totalorder %s20, 0
      %p88 = por %p86, %p87
      %p89 = scmp.ne.s32.totalorder %s75, %s76
      %p90 = scmp.eq.s32.totalorder %s21, 1
      %p91 = por %p89, %p90
      %p93 = scmp.ne.s32.totalorder %s76, %s92
      %p94 = scmp.eq.s32.totalorder %s21, 0
      %p95 = por %p93, %p94
      %p96 = scmp.le.s32.totalorder 1, %s15
      %p97 = scmp.lt.s32.totalorder %s15, 3
      %p98 = pnand %p96, %p97
      %p99 = pneg %p98
      // Predicated region
      $region9: #{tpu_custom_call.1} parent=5 // pred_check
        _
      $region10: #{tpu_custom_call.1} parent=5 // pred_check_branch
        %101 = sbr.rel (%p98) target = $region12
      $region11: #{tpu_custom_call.1} parent=5 // pred_region
        %s102 = ssub.s32 %s15, 1
        // Predicated region
        $region13: #{tpu_custom_call.1} parent=11 // pred_check
          %p103 = pneg %p62
        $region14: #{tpu_custom_call.1} parent=11 // pred_check_branch
          %105 = sbr.rel (%p103) target = $region16
        $region15: #{tpu_custom_call.1} parent=11 // pred_region
          %s107 = ssub.s32 32768, 32768
          %108 = vsyncadd [#allocation6], %s107
          %s109 = sshll.u32 [#allocation5], 4
          %s110 = int_to_ptr.vmem [resolvable:$true] %s109
          %115 = dma.hbm_to_vmem [thread:$0]  %s1, 32768, %s110, [#allocation6], 512, 512, 32
        $region16: #{tpu_custom_call.1} parent=11 // pred_fallthru
          _
      $region12: #{tpu_custom_call.1} parent=5 // pred_fallthru
        _
      %p116 = scmp.lt.s32.totalorder %s15, 2
      // Predicated region
      $region17: #{tpu_custom_call.1} parent=5 // pred_check
        %p117 = pneg %p116
      $region18: #{tpu_custom_call.1} parent=5 // pred_check_branch
        %119 = sbr.rel (%p117) target = $region20
      $region19: #{tpu_custom_call.1} parent=5 // pred_region
        // Predicated region
        $region21: #{tpu_custom_call.1} parent=19 // pred_check
          %p120 = pneg %p35
        $region22: #{tpu_custom_call.1} parent=19 // pred_check_branch
          %122 = sbr.rel (%p120) target = $region24
        $region23: #{tpu_custom_call.1} parent=19 // pred_region
          %s123 = sand.u32 %s25, 1
          %s124 = scalar_lea.sflag [#allocation3], %s123
          %s125 = sand.u32 %s25, 1
          %s126 = smul.addr %s125, 512
          %s127 = scalar_lea.vmem [#allocation2], %s126
          %s128 = smul.u32 16, %s15
          %s130 = ssub.s32 8192, 8192
          %131 = vsyncadd %s124, %s130
          %s132 = smul.addr %s128, 4
          %s133 = smul.addr %s132, 128
          %s134 = scalar_lea.hbm %s0, %s133
          %s135 = sshll.u32 %s127, 4
          %s136 = int_to_ptr.vmem [resolvable:$true] %s135
          %141 = dma.hbm_to_vmem [thread:$0]  %s134, 8192, %s136, %s124, 512, 512, 32
        $region24: #{tpu_custom_call.1} parent=19 // pred_fallthru
          _
      $region20: #{tpu_custom_call.1} parent=5 // pred_fallthru
        _
      %p142 = scmp.le.s32.totalorder 1, %s15
      %p143 = scmp.lt.s32.totalorder %s15, 3
      %p144 = pnand %p142, %p143
      %p145 = pneg %p144
      // Predicated region
      $region25: #{tpu_custom_call.1} parent=5 // pred_check
        _
      $region26: #{tpu_custom_call.1} parent=5 // pred_check_branch
        %147 = sbr.rel (%p144) target = $region28
      $region27: #{tpu_custom_call.1} parent=5 // pred_region
        %s148 = ssub.s32 %s15, 1
        %s149 = sand.u32 %s28, 1
        %s150 = scalar_lea.sflag [#allocation3], %s149
        %s151 = sand.u32 %s28, 1
        %s152 = smul.addr %s151, 512
        %s153 = scalar_lea.vmem [#allocation2], %s152
        // Predicated region
        $region29: #{tpu_custom_call.1} parent=27 // pred_check
          %p154 = pneg %p41
        $region30: #{tpu_custom_call.1} parent=27 // pred_check_branch
          %156 = sbr.rel (%p154) target = $region32
        $region31: #{tpu_custom_call.1} parent=27 // pred_region
          %157 = dma.done %s150, 8192
        $region32: #{tpu_custom_call.1} parent=27 // pred_fallthru
          _
        // Predicated region
        $region33: #{tpu_custom_call.1} parent=27 // pred_check
          %p158 = pneg %p62
        $region34: #{tpu_custom_call.1} parent=27 // pred_check_branch
          %160 = sbr.rel (%p158) target = $region36
        $region35: #{tpu_custom_call.1} parent=27 // pred_region
          %161 = dma.done [#allocation6], 32768
        $region36: #{tpu_custom_call.1} parent=27 // pred_fallthru
          _
        %s162 = sand.u32 %s28, 1
        %s163 = scalar_lea.sflag [#allocation3], %s162
        %s164 = sand.u32 %s28, 1
        %s165 = smul.addr %s164, 512
        %s166 = scalar_lea.vmem [#allocation2], %s165
        %p167 = pneg %p41
        %p168 = pneg %p38
        %p169 = pneg %p62
        %p170 = pneg %p59
        %p171 = pneg %p88
        %p172 = pneg %p85
        %s173 = sand.u32 %s75, 1
        %s174 = scalar_lea.sflag [#allocation4], %s173
        %s175 = sand.u32 %s75, 1
        %s176 = smul.addr %s175, 512
        %s177 = scalar_lea.vmem [#allocation7], %s176
        %s178 = smul.u32 16, %s20
        %s179 = smul.u32 16, %s20
        %v180 = vld [vmem:[%s153] sm:$0xff]
        %v181 = vld [vmem:[%s153 + $0x8] sm:$0xff]
        %v182 = vld [vmem:[%s153 + $0x10] sm:$0xff]
        %v183 = vld [vmem:[%s153 + $0x18] sm:$0xff]
        %v184 = vld [vmem:[%s153 + $0x20] sm:$0xff]
        %v185 = vld [vmem:[%s153 + $0x28] sm:$0xff]
        %v186 = vld [vmem:[%s153 + $0x30] sm:$0xff]
        %v187 = vld [vmem:[%s153 + $0x38] sm:$0xff]
        %v188 = vld [vmem:[%s153 + $0x40] sm:$0xff]
        %v189 = vld [vmem:[%s153 + $0x48] sm:$0xff]
        %v190 = vld [vmem:[%s153 + $0x50] sm:$0xff]
        %v191 = vld [vmem:[%s153 + $0x58] sm:$0xff]
        %v192 = vld [vmem:[%s153 + $0x60] sm:$0xff]
        %v193 = vld [vmem:[%s153 + $0x68] sm:$0xff]
        %v194 = vld [vmem:[%s153 + $0x70] sm:$0xff]
        %v195 = vld [vmem:[%s153 + $0x78] sm:$0xff]
        %v196 = vld [vmem:[%s153 + $0x80] sm:$0xff]
        %v197 = vld [vmem:[%s153 + $0x88] sm:$0xff]
        %v198 = vld [vmem:[%s153 + $0x90] sm:$0xff]
        %v199 = vld [vmem:[%s153 + $0x98] sm:$0xff]
        %v200 = vld [vmem:[%s153 + $0xa0] sm:$0xff]
        %v201 = vld [vmem:[%s153 + $0xa8] sm:$0xff]
        %v202 = vld [vmem:[%s153 + $0xb0] sm:$0xff]
        %v203 = vld [vmem:[%s153 + $0xb8] sm:$0xff]
        %v204 = vld [vmem:[%s153 + $0xc0] sm:$0xff]
        %v205 = vld [vmem:[%s153 + $0xc8] sm:$0xff]
        %v206 = vld [vmem:[%s153 + $0xd0] sm:$0xff]
        %v207 = vld [vmem:[%s153 + $0xd8] sm:$0xff]
        %v208 = vld [vmem:[%s153 + $0xe0] sm:$0xff]
        %v209 = vld [vmem:[%s153 + $0xe8] sm:$0xff]
        %v210 = vld [vmem:[%s153 + $0xf0] sm:$0xff]
        %v211 = vld [vmem:[%s153 + $0xf8] sm:$0xff]
        %v212 = vld [vmem:[%s153 + $0x100] sm:$0xff]
        %v213 = vld [vmem:[%s153 + $0x108] sm:$0xff]
        %v214 = vld [vmem:[%s153 + $0x110] sm:$0xff]
        %v215 = vld [vmem:[%s153 + $0x118] sm:$0xff]
        %v216 = vld [vmem:[%s153 + $0x120] sm:$0xff]
        %v217 = vld [vmem:[%s153 + $0x128] sm:$0xff]
        %v218 = vld [vmem:[%s153 + $0x130] sm:$0xff]
        %v219 = vld [vmem:[%s153 + $0x138] sm:$0xff]
        %v220 = vld [vmem:[%s153 + $0x140] sm:$0xff]
        %v221 = vld [vmem:[%s153 + $0x148] sm:$0xff]
        %v222 = vld [vmem:[%s153 + $0x150] sm:$0xff]
        %v223 = vld [vmem:[%s153 + $0x158] sm:$0xff]
        %v224 = vld [vmem:[%s153 + $0x160] sm:$0xff]
        %v225 = vld [vmem:[%s153 + $0x168] sm:$0xff]
        %v226 = vld [vmem:[%s153 + $0x170] sm:$0xff]
        %v227 = vld [vmem:[%s153 + $0x178] sm:$0xff]
        %v228 = vld [vmem:[%s153 + $0x180] sm:$0xff]
        %v229 = vld [vmem:[%s153 + $0x188] sm:$0xff]
        %v230 = vld [vmem:[%s153 + $0x190] sm:$0xff]
        %v231 = vld [vmem:[%s153 + $0x198] sm:$0xff]
        %v232 = vld [vmem:[%s153 + $0x1a0] sm:$0xff]
        %v233 = vld [vmem:[%s153 + $0x1a8] sm:$0xff]
        %v234 = vld [vmem:[%s153 + $0x1b0] sm:$0xff]
        %v235 = vld [vmem:[%s153 + $0x1b8] sm:$0xff]
        %v236 = vld [vmem:[%s153 + $0x1c0] sm:$0xff]
        %v237 = vld [vmem:[%s153 + $0x1c8] sm:$0xff]
        %v238 = vld [vmem:[%s153 + $0x1d0] sm:$0xff]
        %v239 = vld [vmem:[%s153 + $0x1d8] sm:$0xff]
        %v240 = vld [vmem:[%s153 + $0x1e0] sm:$0xff]
        %v241 = vld [vmem:[%s153 + $0x1e8] sm:$0xff]
        %v242 = vld [vmem:[%s153 + $0x1f0] sm:$0xff]
        %v243 = vld [vmem:[%s153 + $0x1f8] sm:$0xff]
        %v244 = vld [vmem:[#allocation5] sm:$0xff]
        %v245 = vld [vmem:[#allocation5 + $0x8] sm:$0xff]
        %v246 = vld [vmem:[#allocation5 + $0x10] sm:$0xff]
        %v247 = vld [vmem:[#allocation5 + $0x18] sm:$0xff]
        %v248 = vld [vmem:[#allocation5 + $0x20] sm:$0xff]
        %v249 = vld [vmem:[#allocation5 + $0x28] sm:$0xff]
        %v250 = vld [vmem:[#allocation5 + $0x30] sm:$0xff]
        %v251 = vld [vmem:[#allocation5 + $0x38] sm:$0xff]
        %v252 = vld [vmem:[#allocation5 + $0x40] sm:$0xff]
        %v253 = vld [vmem:[#allocation5 + $0x48] sm:$0xff]
        %v254 = vld [vmem:[#allocation5 + $0x50] sm:$0xff]
        %v255 = vld [vmem:[#allocation5 + $0x58] sm:$0xff]
        %v256 = vld [vmem:[#allocation5 + $0x60] sm:$0xff]
        %v257 = vld [vmem:[#allocation5 + $0x68] sm:$0xff]
        %v258 = vld [vmem:[#allocation5 + $0x70] sm:$0xff]
        %v259 = vld [vmem:[#allocation5 + $0x78] sm:$0xff]
        %v260 = vld [vmem:[#allocation5 + $0x80] sm:$0xff]
        %v261 = vld [vmem:[#allocation5 + $0x88] sm:$0xff]
        %v262 = vld [vmem:[#allocation5 + $0x90] sm:$0xff]
        %v263 = vld [vmem:[#allocation5 + $0x98] sm:$0xff]
        %v264 = vld [vmem:[#allocation5 + $0xa0] sm:$0xff]
        %v265 = vld [vmem:[#allocation5 + $0xa8] sm:$0xff]
        %v266 = vld [vmem:[#allocation5 + $0xb0] sm:$0xff]
        %v267 = vld [vmem:[#allocation5 + $0xb8] sm:$0xff]
        %v268 = vld [vmem:[#allocation5 + $0xc0] sm:$0xff]
        %v269 = vld [vmem:[#allocation5 + $0xc8] sm:$0xff]
        %v270 = vld [vmem:[#allocation5 + $0xd0] sm:$0xff]
        %v271 = vld [vmem:[#allocation5 + $0xd8] sm:$0xff]
        %v272 = vld [vmem:[#allocation5 + $0xe0] sm:$0xff]
        %v273 = vld [vmem:[#allocation5 + $0xe8] sm:$0xff]
        %v274 = vld [vmem:[#allocation5 + $0xf0] sm:$0xff]
        %v275 = vld [vmem:[#allocation5 + $0xf8] sm:$0xff]
        %v276 = vld [vmem:[#allocation5 + $0x100] sm:$0xff]
        %v277 = vld [vmem:[#allocation5 + $0x108] sm:$0xff]
        %v278 = vld [vmem:[#allocation5 + $0x110] sm:$0xff]
        %v279 = vld [vmem:[#allocation5 + $0x118] sm:$0xff]
        %v280 = vld [vmem:[#allocation5 + $0x120] sm:$0xff]
        %v281 = vld [vmem:[#allocation5 + $0x128] sm:$0xff]
        %v282 = vld [vmem:[#allocation5 + $0x130] sm:$0xff]
        %v283 = vld [vmem:[#allocation5 + $0x138] sm:$0xff]
        %v284 = vld [vmem:[#allocation5 + $0x140] sm:$0xff]
        %v285 = vld [vmem:[#allocation5 + $0x148] sm:$0xff]
        %v286 = vld [vmem:[#allocation5 + $0x150] sm:$0xff]
        %v287 = vld [vmem:[#allocation5 + $0x158] sm:$0xff]
        %v288 = vld [vmem:[#allocation5 + $0x160] sm:$0xff]
        %v289 = vld [vmem:[#allocation5 + $0x168] sm:$0xff]
        %v290 = vld [vmem:[#allocation5 + $0x170] sm:$0xff]
        %v291 = vld [vmem:[#allocation5 + $0x178] sm:$0xff]
        %v292 = vld [vmem:[#allocation5 + $0x180] sm:$0xff]
        %v293 = vld [vmem:[#allocation5 + $0x188] sm:$0xff]
        %v294 = vld [vmem:[#allocation5 + $0x190] sm:$0xff]
        %v295 = vld [vmem:[#allocation5 + $0x198] sm:$0xff]
        %v296 = vld [vmem:[#allocation5 + $0x1a0] sm:$0xff]
        %v297 = vld [vmem:[#allocation5 + $0x1a8] sm:$0xff]
        %v298 = vld [vmem:[#allocation5 + $0x1b0] sm:$0xff]
        %v299 = vld [vmem:[#allocation5 + $0x1b8] sm:$0xff]
        %v300 = vld [vmem:[#allocation5 + $0x1c0] sm:$0xff]
        %v301 = vld [vmem:[#allocation5 + $0x1c8] sm:$0xff]
        %v302 = vld [vmem:[#allocation5 + $0x1d0] sm:$0xff]
        %v303 = vld [vmem:[#allocation5 + $0x1d8] sm:$0xff]
        %v304 = vld [vmem:[#allocation5 + $0x1e0] sm:$0xff]
        %v305 = vld [vmem:[#allocation5 + $0x1e8] sm:$0xff]
        %v306 = vld [vmem:[#allocation5 + $0x1f0] sm:$0xff]
        %v307 = vld [vmem:[#allocation5 + $0x1f8] sm:$0xff]
        %v308 = vld [vmem:[#allocation5 + $0x200] sm:$0xff]
        %v309 = vld [vmem:[#allocation5 + $0x208] sm:$0xff]
        %v310 = vld [vmem:[#allocation5 + $0x210] sm:$0xff]
        %v311 = vld [vmem:[#allocation5 + $0x218] sm:$0xff]
        %v312 = vld [vmem:[#allocation5 + $0x220] sm:$0xff]
        %v313 = vld [vmem:[#allocation5 + $0x228] sm:$0xff]
        %v314 = vld [vmem:[#allocation5 + $0x230] sm:$0xff]
        %v315 = vld [vmem:[#allocation5 + $0x238] sm:$0xff]
        %v316 = vld [vmem:[#allocation5 + $0x240] sm:$0xff]
        %v317 = vld [vmem:[#allocation5 + $0x248] sm:$0xff]
        %v318 = vld [vmem:[#allocation5 + $0x250] sm:$0xff]
        %v319 = vld [vmem:[#allocation5 + $0x258] sm:$0xff]
        %v320 = vld [vmem:[#allocation5 + $0x260] sm:$0xff]
        %v321 = vld [vmem:[#allocation5 + $0x268] sm:$0xff]
        %v322 = vld [vmem:[#allocation5 + $0x270] sm:$0xff]
        %v323 = vld [vmem:[#allocation5 + $0x278] sm:$0xff]
        %v324 = vld [vmem:[#allocation5 + $0x280] sm:$0xff]
        %v325 = vld [vmem:[#allocation5 + $0x288] sm:$0xff]
        %v326 = vld [vmem:[#allocation5 + $0x290] sm:$0xff]
        %v327 = vld [vmem:[#allocation5 + $0x298] sm:$0xff]
        %v328 = vld [vmem:[#allocation5 + $0x2a0] sm:$0xff]
        %v329 = vld [vmem:[#allocation5 + $0x2a8] sm:$0xff]
        %v330 = vld [vmem:[#allocation5 + $0x2b0] sm:$0xff]
        %v331 = vld [vmem:[#allocation5 + $0x2b8] sm:$0xff]
        %v332 = vld [vmem:[#allocation5 + $0x2c0] sm:$0xff]
        %v333 = vld [vmem:[#allocation5 + $0x2c8] sm:$0xff]
        %v334 = vld [vmem:[#allocation5 + $0x2d0] sm:$0xff]
        %v335 = vld [vmem:[#allocation5 + $0x2d8] sm:$0xff]
        %v336 = vld [vmem:[#allocation5 + $0x2e0] sm:$0xff]
        %v337 = vld [vmem:[#allocation5 + $0x2e8] sm:$0xff]
        %v338 = vld [vmem:[#allocation5 + $0x2f0] sm:$0xff]
        %v339 = vld [vmem:[#allocation5 + $0x2f8] sm:$0xff]
        %v340 = vld [vmem:[#allocation5 + $0x300] sm:$0xff]
        %v341 = vld [vmem:[#allocation5 + $0x308] sm:$0xff]
        %v342 = vld [vmem:[#allocation5 + $0x310] sm:$0xff]
        %v343 = vld [vmem:[#allocation5 + $0x318] sm:$0xff]
        %v344 = vld [vmem:[#allocation5 + $0x320] sm:$0xff]
        %v345 = vld [vmem:[#allocation5 + $0x328] sm:$0xff]
        %v346 = vld [vmem:[#allocation5 + $0x330] sm:$0xff]
        %v347 = vld [vmem:[#allocation5 + $0x338] sm:$0xff]
        %v348 = vld [vmem:[#allocation5 + $0x340] sm:$0xff]
        %v349 = vld [vmem:[#allocation5 + $0x348] sm:$0xff]
        %v350 = vld [vmem:[#allocation5 + $0x350] sm:$0xff]
        %v351 = vld [vmem:[#allocation5 + $0x358] sm:$0xff]
        %v352 = vld [vmem:[#allocation5 + $0x360] sm:$0xff]
        %v353 = vld [vmem:[#allocation5 + $0x368] sm:$0xff]
        %v354 = vld [vmem:[#allocation5 + $0x370] sm:$0xff]
        %v355 = vld [vmem:[#allocation5 + $0x378] sm:$0xff]
        %v356 = vld [vmem:[#allocation5 + $0x380] sm:$0xff]
        %v357 = vld [vmem:[#allocation5 + $0x388] sm:$0xff]
        %v358 = vld [vmem:[#allocation5 + $0x390] sm:$0xff]
        %v359 = vld [vmem:[#allocation5 + $0x398] sm:$0xff]
        %v360 = vld [vmem:[#allocation5 + $0x3a0] sm:$0xff]
        %v361 = vld [vmem:[#allocation5 + $0x3a8] sm:$0xff]
        %v362 = vld [vmem:[#allocation5 + $0x3b0] sm:$0xff]
        %v363 = vld [vmem:[#allocation5 + $0x3b8] sm:$0xff]
        %v364 = vld [vmem:[#allocation5 + $0x3c0] sm:$0xff]
        %v365 = vld [vmem:[#allocation5 + $0x3c8] sm:$0xff]
        %v366 = vld [vmem:[#allocation5 + $0x3d0] sm:$0xff]
        %v367 = vld [vmem:[#allocation5 + $0x3d8] sm:$0xff]
        %v368 = vld [vmem:[#allocation5 + $0x3e0] sm:$0xff]
        %v369 = vld [vmem:[#allocation5 + $0x3e8] sm:$0xff]
        %v370 = vld [vmem:[#allocation5 + $0x3f0] sm:$0xff]
        %v371 = vld [vmem:[#allocation5 + $0x3f8] sm:$0xff]
        %v372 = vld [vmem:[#allocation5 + $0x400] sm:$0xff]
        %v373 = vld [vmem:[#allocation5 + $0x408] sm:$0xff]
        %v374 = vld [vmem:[#allocation5 + $0x410] sm:$0xff]
        %v375 = vld [vmem:[#allocation5 + $0x418] sm:$0xff]
        %v376 = vld [vmem:[#allocation5 + $0x420] sm:$0xff]
        %v377 = vld [vmem:[#allocation5 + $0x428] sm:$0xff]
        %v378 = vld [vmem:[#allocation5 + $0x430] sm:$0xff]
        %v379 = vld [vmem:[#allocation5 + $0x438] sm:$0xff]
        %v380 = vld [vmem:[#allocation5 + $0x440] sm:$0xff]
        %v381 = vld [vmem:[#allocation5 + $0x448] sm:$0xff]
        %v382 = vld [vmem:[#allocation5 + $0x450] sm:$0xff]
        %v383 = vld [vmem:[#allocation5 + $0x458] sm:$0xff]
        %v384 = vld [vmem:[#allocation5 + $0x460] sm:$0xff]
        %v385 = vld [vmem:[#allocation5 + $0x468] sm:$0xff]
        %v386 = vld [vmem:[#allocation5 + $0x470] sm:$0xff]
        %v387 = vld [vmem:[#allocation5 + $0x478] sm:$0xff]
        %v388 = vld [vmem:[#allocation5 + $0x480] sm:$0xff]
        %v389 = vld [vmem:[#allocation5 + $0x488] sm:$0xff]
        %v390 = vld [vmem:[#allocation5 + $0x490] sm:$0xff]
        %v391 = vld [vmem:[#allocation5 + $0x498] sm:$0xff]
        %v392 = vld [vmem:[#allocation5 + $0x4a0] sm:$0xff]
        %v393 = vld [vmem:[#allocation5 + $0x4a8] sm:$0xff]
        %v394 = vld [vmem:[#allocation5 + $0x4b0] sm:$0xff]
        %v395 = vld [vmem:[#allocation5 + $0x4b8] sm:$0xff]
        %v396 = vld [vmem:[#allocation5 + $0x4c0] sm:$0xff]
        %v397 = vld [vmem:[#allocation5 + $0x4c8] sm:$0xff]
        %v398 = vld [vmem:[#allocation5 + $0x4d0] sm:$0xff]
        %v399 = vld [vmem:[#allocation5 + $0x4d8] sm:$0xff]
        %v400 = vld [vmem:[#allocation5 + $0x4e0] sm:$0xff]
        %v401 = vld [vmem:[#allocation5 + $0x4e8] sm:$0xff]
        %v402 = vld [vmem:[#allocation5 + $0x4f0] sm:$0xff]
        %v403 = vld [vmem:[#allocation5 + $0x4f8] sm:$0xff]
        %v404 = vld [vmem:[#allocation5 + $0x500] sm:$0xff]
        %v405 = vld [vmem:[#allocation5 + $0x508] sm:$0xff]
        %v406 = vld [vmem:[#allocation5 + $0x510] sm:$0xff]
        %v407 = vld [vmem:[#allocation5 + $0x518] sm:$0xff]
        %v408 = vld [vmem:[#allocation5 + $0x520] sm:$0xff]
        %v409 = vld [vmem:[#allocation5 + $0x528] sm:$0xff]
        %v410 = vld [vmem:[#allocation5 + $0x530] sm:$0xff]
        %v411 = vld [vmem:[#allocation5 + $0x538] sm:$0xff]
        %v412 = vld [vmem:[#allocation5 + $0x540] sm:$0xff]
        %v413 = vld [vmem:[#allocation5 + $0x548] sm:$0xff]
        %v414 = vld [vmem:[#allocation5 + $0x550] sm:$0xff]
        %v415 = vld [vmem:[#allocation5 + $0x558] sm:$0xff]
        %v416 = vld [vmem:[#allocation5 + $0x560] sm:$0xff]
        %v417 = vld [vmem:[#allocation5 + $0x568] sm:$0xff]
        %v418 = vld [vmem:[#allocation5 + $0x570] sm:$0xff]
        %v419 = vld [vmem:[#allocation5 + $0x578] sm:$0xff]
        %v420 = vld [vmem:[#allocation5 + $0x580] sm:$0xff]
        %v421 = vld [vmem:[#allocation5 + $0x588] sm:$0xff]
        %v422 = vld [vmem:[#allocation5 + $0x590] sm:$0xff]
        %v423 = vld [vmem:[#allocation5 + $0x598] sm:$0xff]
        %v424 = vld [vmem:[#allocation5 + $0x5a0] sm:$0xff]
        %v425 = vld [vmem:[#allocation5 + $0x5a8] sm:$0xff]
        %v426 = vld [vmem:[#allocation5 + $0x5b0] sm:$0xff]
        %v427 = vld [vmem:[#allocation5 + $0x5b8] sm:$0xff]
        %v428 = vld [vmem:[#allocation5 + $0x5c0] sm:$0xff]
        %v429 = vld [vmem:[#allocation5 + $0x5c8] sm:$0xff]
        %v430 = vld [vmem:[#allocation5 + $0x5d0] sm:$0xff]
        %v431 = vld [vmem:[#allocation5 + $0x5d8] sm:$0xff]
        %v432 = vld [vmem:[#allocation5 + $0x5e0] sm:$0xff]
        %v433 = vld [vmem:[#allocation5 + $0x5e8] sm:$0xff]
        %v434 = vld [vmem:[#allocation5 + $0x5f0] sm:$0xff]
        %v435 = vld [vmem:[#allocation5 + $0x5f8] sm:$0xff]
        %v436 = vld [vmem:[#allocation5 + $0x600] sm:$0xff]
        %v437 = vld [vmem:[#allocation5 + $0x608] sm:$0xff]
        %v438 = vld [vmem:[#allocation5 + $0x610] sm:$0xff]
        %v439 = vld [vmem:[#allocation5 + $0x618] sm:$0xff]
        %v440 = vld [vmem:[#allocation5 + $0x620] sm:$0xff]
        %v441 = vld [vmem:[#allocation5 + $0x628] sm:$0xff]
        %v442 = vld [vmem:[#allocation5 + $0x630] sm:$0xff]
        %v443 = vld [vmem:[#allocation5 + $0x638] sm:$0xff]
        %v444 = vld [vmem:[#allocation5 + $0x640] sm:$0xff]
        %v445 = vld [vmem:[#allocation5 + $0x648] sm:$0xff]
        %v446 = vld [vmem:[#allocation5 + $0x650] sm:$0xff]
        %v447 = vld [vmem:[#allocation5 + $0x658] sm:$0xff]
        %v448 = vld [vmem:[#allocation5 + $0x660] sm:$0xff]
        %v449 = vld [vmem:[#allocation5 + $0x668] sm:$0xff]
        %v450 = vld [vmem:[#allocation5 + $0x670] sm:$0xff]
        %v451 = vld [vmem:[#allocation5 + $0x678] sm:$0xff]
        %v452 = vld [vmem:[#allocation5 + $0x680] sm:$0xff]
        %v453 = vld [vmem:[#allocation5 + $0x688] sm:$0xff]
        %v454 = vld [vmem:[#allocation5 + $0x690] sm:$0xff]
        %v455 = vld [vmem:[#allocation5 + $0x698] sm:$0xff]
        %v456 = vld [vmem:[#allocation5 + $0x6a0] sm:$0xff]
        %v457 = vld [vmem:[#allocation5 + $0x6a8] sm:$0xff]
        %v458 = vld [vmem:[#allocation5 + $0x6b0] sm:$0xff]
        %v459 = vld [vmem:[#allocation5 + $0x6b8] sm:$0xff]
        %v460 = vld [vmem:[#allocation5 + $0x6c0] sm:$0xff]
        %v461 = vld [vmem:[#allocation5 + $0x6c8] sm:$0xff]
        %v462 = vld [vmem:[#allocation5 + $0x6d0] sm:$0xff]
        %v463 = vld [vmem:[#allocation5 + $0x6d8] sm:$0xff]
        %v464 = vld [vmem:[#allocation5 + $0x6e0] sm:$0xff]
        %v465 = vld [vmem:[#allocation5 + $0x6e8] sm:$0xff]
        %v466 = vld [vmem:[#allocation5 + $0x6f0] sm:$0xff]
        %v467 = vld [vmem:[#allocation5 + $0x6f8] sm:$0xff]
        %v468 = vld [vmem:[#allocation5 + $0x700] sm:$0xff]
        %v469 = vld [vmem:[#allocation5 + $0x708] sm:$0xff]
        %v470 = vld [vmem:[#allocation5 + $0x710] sm:$0xff]
        %v471 = vld [vmem:[#allocation5 + $0x718] sm:$0xff]
        %v472 = vld [vmem:[#allocation5 + $0x720] sm:$0xff]
        %v473 = vld [vmem:[#allocation5 + $0x728] sm:$0xff]
        %v474 = vld [vmem:[#allocation5 + $0x730] sm:$0xff]
        %v475 = vld [vmem:[#allocation5 + $0x738] sm:$0xff]
        %v476 = vld [vmem:[#allocation5 + $0x740] sm:$0xff]
        %v477 = vld [vmem:[#allocation5 + $0x748] sm:$0xff]
        %v478 = vld [vmem:[#allocation5 + $0x750] sm:$0xff]
        %v479 = vld [vmem:[#allocation5 + $0x758] sm:$0xff]
        %v480 = vld [vmem:[#allocation5 + $0x760] sm:$0xff]
        %v481 = vld [vmem:[#allocation5 + $0x768] sm:$0xff]
        %v482 = vld [vmem:[#allocation5 + $0x770] sm:$0xff]
        %v483 = vld [vmem:[#allocation5 + $0x778] sm:$0xff]
        %v484 = vld [vmem:[#allocation5 + $0x780] sm:$0xff]
        %v485 = vld [vmem:[#allocation5 + $0x788] sm:$0xff]
        %v486 = vld [vmem:[#allocation5 + $0x790] sm:$0xff]
        %v487 = vld [vmem:[#allocation5 + $0x798] sm:$0xff]
        %v488 = vld [vmem:[#allocation5 + $0x7a0] sm:$0xff]
        %v489 = vld [vmem:[#allocation5 + $0x7a8] sm:$0xff]
        %v490 = vld [vmem:[#allocation5 + $0x7b0] sm:$0xff]
        %v491 = vld [vmem:[#allocation5 + $0x7b8] sm:$0xff]
        %v492 = vld [vmem:[#allocation5 + $0x7c0] sm:$0xff]
        %v493 = vld [vmem:[#allocation5 + $0x7c8] sm:$0xff]
        %v494 = vld [vmem:[#allocation5 + $0x7d0] sm:$0xff]
        %v495 = vld [vmem:[#allocation5 + $0x7d8] sm:$0xff]
        %v496 = vld [vmem:[#allocation5 + $0x7e0] sm:$0xff]
        %v497 = vld [vmem:[#allocation5 + $0x7e8] sm:$0xff]
        %v498 = vld [vmem:[#allocation5 + $0x7f0] sm:$0xff]
        %v499 = vld [vmem:[#allocation5 + $0x7f8] sm:$0xff]
        %500 = vmatprep.subr.mxu0 %v305
        %501 = vmatpush1.msra.mxu0 %v304
        %502 = vmatprep.subr.mxu0 %v301
        %503 = vmatpush1.msra.mxu0 %v300
        %504 = vmatprep.subr.mxu0 %v297
        %505 = vmatpush1.msra.mxu0 %v296
        %506 = vmatprep.subr.mxu0 %v293
        %507 = vmatpush1.msra.mxu0 %v292
        %508 = vmatprep.subr.mxu0 %v289
        %509 = vmatpush1.msra.mxu0 %v288
        %510 = vmatprep.subr.mxu0 %v285
        %511 = vmatpush1.msra.mxu0 %v284
        %512 = vmatprep.subr.mxu0 %v281
        %513 = vmatpush1.msra.mxu0 %v280
        %514 = vmatprep.subr.mxu0 %v277
        %515 = vmatpush1.msra.mxu0 %v276
        %516 = vmatprep.subr.mxu0 %v273
        %517 = vmatpush1.msra.mxu0 %v272
        %518 = vmatprep.subr.mxu0 %v269
        %519 = vmatpush1.msra.mxu0 %v268
        %520 = vmatprep.subr.mxu0 %v265
        %521 = vmatpush1.msra.mxu0 %v264
        %522 = vmatprep.subr.mxu0 %v261
        %523 = vmatpush1.msra.mxu0 %v260
        %524 = vmatprep.subr.mxu0 %v257
        %525 = vmatpush1.msra.mxu0 %v256
        %526 = vmatprep.subr.mxu0 %v253
        %527 = vmatpush1.msra.mxu0 %v252
        %528 = vmatprep.subr.mxu0 %v249
        %529 = vmatpush1.msra.mxu0 %v248
        %530 = vmatprep.subr.mxu0 %v245
        %531 = vmatpush1.msra.mxu0 %v244
        %532 = vmatprep.subr.mxu0 %v369
        %533 = vmatpush2.msra.mxu0 %v368
        %534 = vmatprep.subr.mxu0 %v365
        %535 = vmatpush2.msra.mxu0 %v364
        %536 = vmatprep.subr.mxu0 %v361
        %537 = vmatpush2.msra.mxu0 %v360
        %538 = vmatprep.subr.mxu0 %v357
        %539 = vmatpush2.msra.mxu0 %v356
        %540 = vmatprep.subr.mxu0 %v353
        %541 = vmatpush2.msra.mxu0 %v352
        %542 = vmatprep.subr.mxu0 %v349
        %543 = vmatpush2.msra.mxu0 %v348
        %544 = vmatprep.subr.mxu0 %v345
        %545 = vmatpush2.msra.mxu0 %v344
        %546 = vmatprep.subr.mxu0 %v341
        %547 = vmatpush2.msra.mxu0 %v340
        %548 = vmatprep.subr.mxu0 %v337
        %549 = vmatpush2.msra.mxu0 %v336
        %550 = vmatprep.subr.mxu0 %v333
        %551 = vmatpush2.msra.mxu0 %v332
        %552 = vmatprep.subr.mxu0 %v329
        %553 = vmatpush2.msra.mxu0 %v328
        %554 = vmatprep.subr.mxu0 %v325
        %555 = vmatpush2.msra.mxu0 %v324
        %556 = vmatprep.subr.mxu0 %v321
        %557 = vmatpush2.msra.mxu0 %v320
        %558 = vmatprep.subr.mxu0 %v317
        %559 = vmatpush2.msra.mxu0 %v316
        %560 = vmatprep.subr.mxu0 %v313
        %561 = vmatpush2.msra.mxu0 %v312
        %562 = vmatprep.subr.mxu0 %v309
        %563 = vmatpush2.msra.mxu0 %v308
        %564 = vmatprep.mubr.f32.mxu0 %v181
        %565 = vmatmul.mubr.f32.gmra.mxu0 %v180
        %v566 = vpop.f32.mrf.mxu0
        %v567 = vadd.f32 0.0, %v566
        %v568 = vpop.f32.mrf.mxu0
        %v569 = vadd.f32 0.0, %v568
        %570 = vmatprep.mubr.f32.mxu0 %v185
        %571 = vmatmul.mubr.f32.gmra.mxu0 %v184
        %v572 = vpop.f32.mrf.mxu0
        %v573 = vadd.f32 0.0, %v572
        %v574 = vpop.f32.mrf.mxu0
        %v575 = vadd.f32 0.0, %v574
        %576 = vmatprep.mubr.f32.mxu0 %v189
        %577 = vmatmul.mubr.f32.gmra.mxu0 %v188
        %v578 = vpop.f32.mrf.mxu0
        %v579 = vadd.f32 0.0, %v578
        %v580 = vpop.f32.mrf.mxu0
        %v581 = vadd.f32 0.0, %v580
        %582 = vmatprep.mubr.f32.mxu0 %v193
        %583 = vmatmul.mubr.f32.gmra.mxu0 %v192
        %v584 = vpop.f32.mrf.mxu0
        %v585 = vadd.f32 0.0, %v584
        %v586 = vpop.f32.mrf.mxu0
        %v587 = vadd.f32 0.0, %v586
        %588 = vmatprep.mubr.f32.mxu0 %v197
        %589 = vmatmul.mubr.f32.gmra.mxu0 %v196
        %v590 = vpop.f32.mrf.mxu0
        %v591 = vadd.f32 0.0, %v590
        %v592 = vpop.f32.mrf.mxu0
        %v593 = vadd.f32 0.0, %v592
        %594 = vmatprep.mubr.f32.mxu0 %v201
        %595 = vmatmul.mubr.f32.gmra.mxu0 %v200
        %v596 = vpop.f32.mrf.mxu0
        %v597 = vadd.f32 0.0, %v596
        %v598 = vpop.f32.mrf.mxu0
        %v599 = vadd.f32 0.0, %v598
        %600 = vmatprep.mubr.f32.mxu0 %v205
        %601 = vmatmul.mubr.f32.gmra.mxu0 %v204
        %v602 = vpop.f32.mrf.mxu0
        %v603 = vadd.f32 0.0, %v602
        %v604 = vpop.f32.mrf.mxu0
        %v605 = vadd.f32 0.0, %v604
        %606 = vmatprep.mubr.f32.mxu0 %v209
        %607 = vmatmul.mubr.f32.gmra.mxu0 %v208
        %v608 = vpop.f32.mrf.mxu0
        %v609 = vadd.f32 0.0, %v608
        %v610 = vpop.f32.mrf.mxu0
        %v611 = vadd.f32 0.0, %v610
        %612 = vmatprep.mubr.f32.mxu0 %v213
        %613 = vmatmul.mubr.f32.gmra.mxu0 %v212
        %v614 = vpop.f32.mrf.mxu0
        %v615 = vadd.f32 0.0, %v614
        %v616 = vpop.f32.mrf.mxu0
        %v617 = vadd.f32 0.0, %v616
        %618 = vmatprep.mubr.f32.mxu0 %v217
        %619 = vmatmul.mubr.f32.gmra.mxu0 %v216
        %v620 = vpop.f32.mrf.mxu0
        %v621 = vadd.f32 0.0, %v620
        %v622 = vpop.f32.mrf.mxu0
        %v623 = vadd.f32 0.0, %v622
        %624 = vmatprep.mubr.f32.mxu0 %v221
        %625 = vmatmul.mubr.f32.gmra.mxu0 %v220
        %v626 = vpop.f32.mrf.mxu0
        %v627 = vadd.f32 0.0, %v626
        %v628 = vpop.f32.mrf.mxu0
        %v629 = vadd.f32 0.0, %v628
        %630 = vmatprep.mubr.f32.mxu0 %v225
        %631 = vmatmul.mubr.f32.gmra.mxu0 %v224
        %v632 = vpop.f32.mrf.mxu0
        %v633 = vadd.f32 0.0, %v632
        %v634 = vpop.f32.mrf.mxu0
        %v635 = vadd.f32 0.0, %v634
        %636 = vmatprep.mubr.f32.mxu0 %v229
        %637 = vmatmul.mubr.f32.gmra.mxu0 %v228
        %v638 = vpop.f32.mrf.mxu0
        %v639 = vadd.f32 0.0, %v638
        %v640 = vpop.f32.mrf.mxu0
        %v641 = vadd.f32 0.0, %v640
        %642 = vmatprep.mubr.f32.mxu0 %v233
        %643 = vmatmul.mubr.f32.gmra.mxu0 %v232
        %v644 = vpop.f32.mrf.mxu0
        %v645 = vadd.f32 0.0, %v644
        %v646 = vpop.f32.mrf.mxu0
        %v647 = vadd.f32 0.0, %v646
        %648 = vmatprep.mubr.f32.mxu0 %v237
        %649 = vmatmul.mubr.f32.gmra.mxu0 %v236
        %v650 = vpop.f32.mrf.mxu0
        %v651 = vadd.f32 0.0, %v650
        %v652 = vpop.f32.mrf.mxu0
        %v653 = vadd.f32 0.0, %v652
        %654 = vmatprep.mubr.f32.mxu0 %v241
        %655 = vmatmul.mubr.f32.gmra.mxu0 %v240
        %v656 = vpop.f32.mrf.mxu0
        %v657 = vadd.f32 0.0, %v656
        %v658 = vpop.f32.mrf.mxu0
        %v659 = vadd.f32 0.0, %v658
        %660 = vdwg.mxu0
        %661 = vmatprep.subr.mxu0 %v433
        %662 = vmatpush1.msra.mxu0 %v432
        %663 = vmatprep.subr.mxu0 %v429
        %664 = vmatpush1.msra.mxu0 %v428
        %665 = vmatprep.subr.mxu0 %v425
        %666 = vmatpush1.msra.mxu0 %v424
        %667 = vmatprep.subr.mxu0 %v421
        %668 = vmatpush1.msra.mxu0 %v420
        %669 = vmatprep.subr.mxu0 %v417
        %670 = vmatpush1.msra.mxu0 %v416
        %671 = vmatprep.subr.mxu0 %v413
        %672 = vmatpush1.msra.mxu0 %v412
        %673 = vmatprep.subr.mxu0 %v409
        %674 = vmatpush1.msra.mxu0 %v408
        %675 = vmatprep.subr.mxu0 %v405
        %676 = vmatpush1.msra.mxu0 %v404
        %677 = vmatprep.subr.mxu0 %v401
        %678 = vmatpush1.msra.mxu0 %v400
        %679 = vmatprep.subr.mxu0 %v397
        %680 = vmatpush1.msra.mxu0 %v396
        %681 = vmatprep.subr.mxu0 %v393
        %682 = vmatpush1.msra.mxu0 %v392
        %683 = vmatprep.subr.mxu0 %v389
        %684 = vmatpush1.msra.mxu0 %v388
        %685 = vmatprep.subr.mxu0 %v385
        %686 = vmatpush1.msra.mxu0 %v384
        %687 = vmatprep.subr.mxu0 %v381
        %688 = vmatpush1.msra.mxu0 %v380
        %689 = vmatprep.subr.mxu0 %v377
        %690 = vmatpush1.msra.mxu0 %v376
        %691 = vmatprep.subr.mxu0 %v373
        %692 = vmatpush1.msra.mxu0 %v372
        %693 = vmatprep.subr.mxu0 %v497
        %694 = vmatpush2.msra.mxu0 %v496
        %695 = vmatprep.subr.mxu0 %v493
        %696 = vmatpush2.msra.mxu0 %v492
        %697 = vmatprep.subr.mxu0 %v489
        %698 = vmatpush2.msra.mxu0 %v488
        %699 = vmatprep.subr.mxu0 %v485
        %700 = vmatpush2.msra.mxu0 %v484
        %701 = vmatprep.subr.mxu0 %v481
        %702 = vmatpush2.msra.mxu0 %v480
        %703 = vmatprep.subr.mxu0 %v477
        %704 = vmatpush2.msra.mxu0 %v476
        %705 = vmatprep.subr.mxu0 %v473
        %706 = vmatpush2.msra.mxu0 %v472
        %707 = vmatprep.subr.mxu0 %v469
        %708 = vmatpush2.msra.mxu0 %v468
        %709 = vmatprep.subr.mxu0 %v465
        %710 = vmatpush2.msra.mxu0 %v464
        %711 = vmatprep.subr.mxu0 %v461
        %712 = vmatpush2.msra.mxu0 %v460
        %713 = vmatprep.subr.mxu0 %v457
        %714 = vmatpush2.msra.mxu0 %v456
        %715 = vmatprep.subr.mxu0 %v453
        %716 = vmatpush2.msra.mxu0 %v452
        %717 = vmatprep.subr.mxu0 %v449
        %718 = vmatpush2.msra.mxu0 %v448
        %719 = vmatprep.subr.mxu0 %v445
        %720 = vmatpush2.msra.mxu0 %v444
        %721 = vmatprep.subr.mxu0 %v441
        %722 = vmatpush2.msra.mxu0 %v440
        %723 = vmatprep.subr.mxu0 %v437
        %724 = vmatpush2.msra.mxu0 %v436
        %725 = vmatprep.mubr.f32.mxu0 %v183
        %726 = vmatmul.mubr.f32.gmra.mxu0 %v182
        %v727 = vpop.f32.mrf.mxu0
        %v728 = vadd.f32 %v567, %v727
        %v729 = vpop.f32.mrf.mxu0
        %v730 = vadd.f32 %v569, %v729
        %731 = vmatprep.mubr.f32.mxu0 %v187
        %732 = vmatmul.mubr.f32.gmra.mxu0 %v186
        %v733 = vpop.f32.mrf.mxu0
        %v734 = vadd.f32 %v573, %v733
        %v735 = vpop.f32.mrf.mxu0
        %v736 = vadd.f32 %v575, %v735
        %737 = vmatprep.mubr.f32.mxu0 %v191
        %738 = vmatmul.mubr.f32.gmra.mxu0 %v190
        %v739 = vpop.f32.mrf.mxu0
        %v740 = vadd.f32 %v579, %v739
        %v741 = vpop.f32.mrf.mxu0
        %v742 = vadd.f32 %v581, %v741
        %743 = vmatprep.mubr.f32.mxu0 %v195
        %744 = vmatmul.mubr.f32.gmra.mxu0 %v194
        %v745 = vpop.f32.mrf.mxu0
        %v746 = vadd.f32 %v585, %v745
        %v747 = vpop.f32.mrf.mxu0
        %v748 = vadd.f32 %v587, %v747
        %749 = vmatprep.mubr.f32.mxu0 %v199
        %750 = vmatmul.mubr.f32.gmra.mxu0 %v198
        %v751 = vpop.f32.mrf.mxu0
        %v752 = vadd.f32 %v591, %v751
        %v753 = vpop.f32.mrf.mxu0
        %v754 = vadd.f32 %v593, %v753
        %755 = vmatprep.mubr.f32.mxu0 %v203
        %756 = vmatmul.mubr.f32.gmra.mxu0 %v202
        %v757 = vpop.f32.mrf.mxu0
        %v758 = vadd.f32 %v597, %v757
        %v759 = vpop.f32.mrf.mxu0
        %v760 = vadd.f32 %v599, %v759
        %761 = vmatprep.mubr.f32.mxu0 %v207
        %762 = vmatmul.mubr.f32.gmra.mxu0 %v206
        %v763 = vpop.f32.mrf.mxu0
        %v764 = vadd.f32 %v603, %v763
        %v765 = vpop.f32.mrf.mxu0
        %v766 = vadd.f32 %v605, %v765
        %767 = vmatprep.mubr.f32.mxu0 %v211
        %768 = vmatmul.mubr.f32.gmra.mxu0 %v210
        %v769 = vpop.f32.mrf.mxu0
        %v770 = vadd.f32 %v609, %v769
        %v771 = vpop.f32.mrf.mxu0
        %v772 = vadd.f32 %v611, %v771
        %773 = vmatprep.mubr.f32.mxu0 %v215
        %774 = vmatmul.mubr.f32.gmra.mxu0 %v214
        %v775 = vpop.f32.mrf.mxu0
        %v776 = vadd.f32 %v615, %v775
        %v777 = vpop.f32.mrf.mxu0
        %v778 = vadd.f32 %v617, %v777
        %779 = vmatprep.mubr.f32.mxu0 %v219
        %780 = vmatmul.mubr.f32.gmra.mxu0 %v218
        %v781 = vpop.f32.mrf.mxu0
        %v782 = vadd.f32 %v621, %v781
        %v783 = vpop.f32.mrf.mxu0
        %v784 = vadd.f32 %v623, %v783
        %785 = vmatprep.mubr.f32.mxu0 %v223
        %786 = vmatmul.mubr.f32.gmra.mxu0 %v222
        %v787 = vpop.f32.mrf.mxu0
        %v788 = vadd.f32 %v627, %v787
        %v789 = vpop.f32.mrf.mxu0
        %v790 = vadd.f32 %v629, %v789
        %791 = vmatprep.mubr.f32.mxu0 %v227
        %792 = vmatmul.mubr.f32.gmra.mxu0 %v226
        %v793 = vpop.f32.mrf.mxu0
        %v794 = vadd.f32 %v633, %v793
        %v795 = vpop.f32.mrf.mxu0
        %v796 = vadd.f32 %v635, %v795
        %797 = vmatprep.mubr.f32.mxu0 %v231
        %798 = vmatmul.mubr.f32.gmra.mxu0 %v230
        %v799 = vpop.f32.mrf.mxu0
        %v800 = vadd.f32 %v639, %v799
        %v801 = vpop.f32.mrf.mxu0
        %v802 = vadd.f32 %v641, %v801
        %803 = vmatprep.mubr.f32.mxu0 %v235
        %804 = vmatmul.mubr.f32.gmra.mxu0 %v234
        %v805 = vpop.f32.mrf.mxu0
        %v806 = vadd.f32 %v645, %v805
        %v807 = vpop.f32.mrf.mxu0
        %v808 = vadd.f32 %v647, %v807
        %809 = vmatprep.mubr.f32.mxu0 %v239
        %810 = vmatmul.mubr.f32.gmra.mxu0 %v238
        %v811 = vpop.f32.mrf.mxu0
        %v812 = vadd.f32 %v651, %v811
        %v813 = vpop.f32.mrf.mxu0
        %v814 = vadd.f32 %v653, %v813
        %815 = vmatprep.mubr.f32.mxu0 %v243
        %816 = vmatmul.mubr.f32.gmra.mxu0 %v242
        %v817 = vpop.f32.mrf.mxu0
        %v818 = vadd.f32 %v657, %v817
        %v819 = vpop.f32.mrf.mxu0
        %v820 = vadd.f32 %v659, %v819
        %821 = vdwg.mxu0
        %822 = vmatprep.subr.mxu0 %v307
        %823 = vmatpush1.msra.mxu0 %v306
        %824 = vmatprep.subr.mxu0 %v303
        %825 = vmatpush1.msra.mxu0 %v302
        %826 = vmatprep.subr.mxu0 %v299
        %827 = vmatpush1.msra.mxu0 %v298
        %828 = vmatprep.subr.mxu0 %v295
        %829 = vmatpush1.msra.mxu0 %v294
        %830 = vmatprep.subr.mxu0 %v291
        %831 = vmatpush1.msra.mxu0 %v290
        %832 = vmatprep.subr.mxu0 %v287
        %833 = vmatpush1.msra.mxu0 %v286
        %834 = vmatprep.subr.mxu0 %v283
        %835 = vmatpush1.msra.mxu0 %v282
        %836 = vmatprep.subr.mxu0 %v279
        %837 = vmatpush1.msra.mxu0 %v278
        %838 = vmatprep.subr.mxu0 %v275
        %839 = vmatpush1.msra.mxu0 %v274
        %840 = vmatprep.subr.mxu0 %v271
        %841 = vmatpush1.msra.mxu0 %v270
        %842 = vmatprep.subr.mxu0 %v267
        %843 = vmatpush1.msra.mxu0 %v266
        %844 = vmatprep.subr.mxu0 %v263
        %845 = vmatpush1.msra.mxu0 %v262
        %846 = vmatprep.subr.mxu0 %v259
        %847 = vmatpush1.msra.mxu0 %v258
        %848 = vmatprep.subr.mxu0 %v255
        %849 = vmatpush1.msra.mxu0 %v254
        %850 = vmatprep.subr.mxu0 %v251
        %851 = vmatpush1.msra.mxu0 %v250
        %852 = vmatprep.subr.mxu0 %v247
        %853 = vmatpush1.msra.mxu0 %v246
        %854 = vmatprep.subr.mxu0 %v371
        %855 = vmatpush2.msra.mxu0 %v370
        %856 = vmatprep.subr.mxu0 %v367
        %857 = vmatpush2.msra.mxu0 %v366
        %858 = vmatprep.subr.mxu0 %v363
        %859 = vmatpush2.msra.mxu0 %v362
        %860 = vmatprep.subr.mxu0 %v359
        %861 = vmatpush2.msra.mxu0 %v358
        %862 = vmatprep.subr.mxu0 %v355
        %863 = vmatpush2.msra.mxu0 %v354
        %864 = vmatprep.subr.mxu0 %v351
        %865 = vmatpush2.msra.mxu0 %v350
        %866 = vmatprep.subr.mxu0 %v347
        %867 = vmatpush2.msra.mxu0 %v346
        %868 = vmatprep.subr.mxu0 %v343
        %869 = vmatpush2.msra.mxu0 %v342
        %870 = vmatprep.subr.mxu0 %v339
        %871 = vmatpush2.msra.mxu0 %v338
        %872 = vmatprep.subr.mxu0 %v335
        %873 = vmatpush2.msra.mxu0 %v334
        %874 = vmatprep.subr.mxu0 %v331
        %875 = vmatpush2.msra.mxu0 %v330
        %876 = vmatprep.subr.mxu0 %v327
        %877 = vmatpush2.msra.mxu0 %v326
        %878 = vmatprep.subr.mxu0 %v323
        %879 = vmatpush2.msra.mxu0 %v322
        %880 = vmatprep.subr.mxu0 %v319
        %881 = vmatpush2.msra.mxu0 %v318
        %882 = vmatprep.subr.mxu0 %v315
        %883 = vmatpush2.msra.mxu0 %v314
        %884 = vmatprep.subr.mxu0 %v311
        %885 = vmatpush2.msra.mxu0 %v310
        %886 = vmatprep.mubr.f32.mxu0 %v181
        %887 = vmatmul.mubr.f32.gmra.mxu0 %v180
        %v888 = vpop.f32.mrf.mxu0
        %v889 = vadd.f32 0.0, %v888
        %v890 = vpop.f32.mrf.mxu0
        %v891 = vadd.f32 0.0, %v890
        %892 = vmatprep.mubr.f32.mxu0 %v185
        %893 = vmatmul.mubr.f32.gmra.mxu0 %v184
        %v894 = vpop.f32.mrf.mxu0
        %v895 = vadd.f32 0.0, %v894
        %v896 = vpop.f32.mrf.mxu0
        %v897 = vadd.f32 0.0, %v896
        %898 = vmatprep.mubr.f32.mxu0 %v189
        %899 = vmatmul.mubr.f32.gmra.mxu0 %v188
        %v900 = vpop.f32.mrf.mxu0
        %v901 = vadd.f32 0.0, %v900
        %v902 = vpop.f32.mrf.mxu0
        %v903 = vadd.f32 0.0, %v902
        %904 = vmatprep.mubr.f32.mxu0 %v193
        %905 = vmatmul.mubr.f32.gmra.mxu0 %v192
        %v906 = vpop.f32.mrf.mxu0
        %v907 = vadd.f32 0.0, %v906
        %v908 = vpop.f32.mrf.mxu0
        %v909 = vadd.f32 0.0, %v908
        %910 = vmatprep.mubr.f32.mxu0 %v197
        %911 = vmatmul.mubr.f32.gmra.mxu0 %v196
        %v912 = vpop.f32.mrf.mxu0
        %v913 = vadd.f32 0.0, %v912
        %v914 = vpop.f32.mrf.mxu0
        %v915 = vadd.f32 0.0, %v914
        %916 = vmatprep.mubr.f32.mxu0 %v201
        %917 = vmatmul.mubr.f32.gmra.mxu0 %v200
        %v918 = vpop.f32.mrf.mxu0
        %v919 = vadd.f32 0.0, %v918
        %v920 = vpop.f32.mrf.mxu0
        %v921 = vadd.f32 0.0, %v920
        %922 = vmatprep.mubr.f32.mxu0 %v205
        %923 = vmatmul.mubr.f32.gmra.mxu0 %v204
        %v924 = vpop.f32.mrf.mxu0
        %v925 = vadd.f32 0.0, %v924
        %v926 = vpop.f32.mrf.mxu0
        %v927 = vadd.f32 0.0, %v926
        %928 = vmatprep.mubr.f32.mxu0 %v209
        %929 = vmatmul.mubr.f32.gmra.mxu0 %v208
        %v930 = vpop.f32.mrf.mxu0
        %v931 = vadd.f32 0.0, %v930
        %v932 = vpop.f32.mrf.mxu0
        %v933 = vadd.f32 0.0, %v932
        %934 = vmatprep.mubr.f32.mxu0 %v213
        %935 = vmatmul.mubr.f32.gmra.mxu0 %v212
        %v936 = vpop.f32.mrf.mxu0
        %v937 = vadd.f32 0.0, %v936
        %v938 = vpop.f32.mrf.mxu0
        %v939 = vadd.f32 0.0, %v938
        %940 = vmatprep.mubr.f32.mxu0 %v217
        %941 = vmatmul.mubr.f32.gmra.mxu0 %v216
        %v942 = vpop.f32.mrf.mxu0
        %v943 = vadd.f32 0.0, %v942
        %v944 = vpop.f32.mrf.mxu0
        %v945 = vadd.f32 0.0, %v944
        %946 = vmatprep.mubr.f32.mxu0 %v221
        %947 = vmatmul.mubr.f32.gmra.mxu0 %v220
        %v948 = vpop.f32.mrf.mxu0
        %v949 = vadd.f32 0.0, %v948
        %v950 = vpop.f32.mrf.mxu0
        %v951 = vadd.f32 0.0, %v950
        %952 = vmatprep.mubr.f32.mxu0 %v225
        %953 = vmatmul.mubr.f32.gmra.mxu0 %v224
        %v954 = vpop.f32.mrf.mxu0
        %v955 = vadd.f32 0.0, %v954
        %v956 = vpop.f32.mrf.mxu0
        %v957 = vadd.f32 0.0, %v956
        %958 = vmatprep.mubr.f32.mxu0 %v229
        %959 = vmatmul.mubr.f32.gmra.mxu0 %v228
        %v960 = vpop.f32.mrf.mxu0
        %v961 = vadd.f32 0.0, %v960
        %v962 = vpop.f32.mrf.mxu0
        %v963 = vadd.f32 0.0, %v962
        %964 = vmatprep.mubr.f32.mxu0 %v233
        %965 = vmatmul.mubr.f32.gmra.mxu0 %v232
        %v966 = vpop.f32.mrf.mxu0
        %v967 = vadd.f32 0.0, %v966
        %v968 = vpop.f32.mrf.mxu0
        %v969 = vadd.f32 0.0, %v968
        %970 = vmatprep.mubr.f32.mxu0 %v237
        %971 = vmatmul.mubr.f32.gmra.mxu0 %v236
        %v972 = vpop.f32.mrf.mxu0
        %v973 = vadd.f32 0.0, %v972
        %v974 = vpop.f32.mrf.mxu0
        %v975 = vadd.f32 0.0, %v974
        %976 = vmatprep.mubr.f32.mxu0 %v241
        %977 = vmatmul.mubr.f32.gmra.mxu0 %v240
        %v978 = vpop.f32.mrf.mxu0
        %v979 = vadd.f32 0.0, %v978
        %v980 = vpop.f32.mrf.mxu0
        %v981 = vadd.f32 0.0, %v980
        %982 = vdwg.mxu0
        %983 = vmatprep.subr.mxu0 %v435
        %984 = vmatpush1.msra.mxu0 %v434
        %985 = vmatprep.subr.mxu0 %v431
        %986 = vmatpush1.msra.mxu0 %v430
        %987 = vmatprep.subr.mxu0 %v427
        %988 = vmatpush1.msra.mxu0 %v426
        %989 = vmatprep.subr.mxu0 %v423
        %990 = vmatpush1.msra.mxu0 %v422
        %991 = vmatprep.subr.mxu0 %v419
        %992 = vmatpush1.msra.mxu0 %v418
        %993 = vmatprep.subr.mxu0 %v415
        %994 = vmatpush1.msra.mxu0 %v414
        %995 = vmatprep.subr.mxu0 %v411
        %996 = vmatpush1.msra.mxu0 %v410
        %997 = vmatprep.subr.mxu0 %v407
        %998 = vmatpush1.msra.mxu0 %v406
        %999 = vmatprep.subr.mxu0 %v403
        %1000 = vmatpush1.msra.mxu0 %v402
        %1001 = vmatprep.subr.mxu0 %v399
        %1002 = vmatpush1.msra.mxu0 %v398
        %1003 = vmatprep.subr.mxu0 %v395
        %1004 = vmatpush1.msra.mxu0 %v394
        %1005 = vmatprep.subr.mxu0 %v391
        %1006 = vmatpush1.msra.mxu0 %v390
        %1007 = vmatprep.subr.mxu0 %v387
        %1008 = vmatpush1.msra.mxu0 %v386
        %1009 = vmatprep.subr.mxu0 %v383
        %1010 = vmatpush1.msra.mxu0 %v382
        %1011 = vmatprep.subr.mxu0 %v379
        %1012 = vmatpush1.msra.mxu0 %v378
        %1013 = vmatprep.subr.mxu0 %v375
        %1014 = vmatpush1.msra.mxu0 %v374
        %1015 = vmatprep.subr.mxu0 %v499
        %1016 = vmatpush2.msra.mxu0 %v498
        %1017 = vmatprep.subr.mxu0 %v495
        %1018 = vmatpush2.msra.mxu0 %v494
        %1019 = vmatprep.subr.mxu0 %v491
        %1020 = vmatpush2.msra.mxu0 %v490
        %1021 = vmatprep.subr.mxu0 %v487
        %1022 = vmatpush2.msra.mxu0 %v486
        %1023 = vmatprep.subr.mxu0 %v483
        %1024 = vmatpush2.msra.mxu0 %v482
        %1025 = vmatprep.subr.mxu0 %v479
        %1026 = vmatpush2.msra.mxu0 %v478
        %1027 = vmatprep.subr.mxu0 %v475
        %1028 = vmatpush2.msra.mxu0 %v474
        %1029 = vmatprep.subr.mxu0 %v471
        %1030 = vmatpush2.msra.mxu0 %v470
        %1031 = vmatprep.subr.mxu0 %v467
        %1032 = vmatpush2.msra.mxu0 %v466
        %1033 = vmatprep.subr.mxu0 %v463
        %1034 = vmatpush2.msra.mxu0 %v462
        %1035 = vmatprep.subr.mxu0 %v459
        %1036 = vmatpush2.msra.mxu0 %v458
        %1037 = vmatprep.subr.mxu0 %v455
        %1038 = vmatpush2.msra.mxu0 %v454
        %1039 = vmatprep.subr.mxu0 %v451
        %1040 = vmatpush2.msra.mxu0 %v450
        %1041 = vmatprep.subr.mxu0 %v447
        %1042 = vmatpush2.msra.mxu0 %v446
        %1043 = vmatprep.subr.mxu0 %v443
        %1044 = vmatpush2.msra.mxu0 %v442
        %1045 = vmatprep.subr.mxu0 %v439
        %1046 = vmatpush2.msra.mxu0 %v438
        %1047 = vmatprep.mubr.f32.mxu0 %v183
        %1048 = vmatmul.mubr.f32.gmra.mxu0 %v182
        %v1049 = vpop.f32.mrf.mxu0
        %v1050 = vadd.f32 %v889, %v1049
        %v1051 = vpop.f32.mrf.mxu0
        %v1052 = vadd.f32 %v891, %v1051
        %1053 = vmatprep.mubr.f32.mxu0 %v187
        %1054 = vmatmul.mubr.f32.gmra.mxu0 %v186
        %v1055 = vpop.f32.mrf.mxu0
        %v1056 = vadd.f32 %v895, %v1055
        %v1057 = vpop.f32.mrf.mxu0
        %v1058 = vadd.f32 %v897, %v1057
        %1059 = vmatprep.mubr.f32.mxu0 %v191
        %1060 = vmatmul.mubr.f32.gmra.mxu0 %v190
        %v1061 = vpop.f32.mrf.mxu0
        %v1062 = vadd.f32 %v901, %v1061
        %v1063 = vpop.f32.mrf.mxu0
        %v1064 = vadd.f32 %v903, %v1063
        %1065 = vmatprep.mubr.f32.mxu0 %v195
        %1066 = vmatmul.mubr.f32.gmra.mxu0 %v194
        %v1067 = vpop.f32.mrf.mxu0
        %v1068 = vadd.f32 %v907, %v1067
        %v1069 = vpop.f32.mrf.mxu0
        %v1070 = vadd.f32 %v909, %v1069
        %1071 = vmatprep.mubr.f32.mxu0 %v199
        %1072 = vmatmul.mubr.f32.gmra.mxu0 %v198
        %v1073 = vpop.f32.mrf.mxu0
        %v1074 = vadd.f32 %v913, %v1073
        %v1075 = vpop.f32.mrf.mxu0
        %v1076 = vadd.f32 %v915, %v1075
        %1077 = vmatprep.mubr.f32.mxu0 %v203
        %1078 = vmatmul.mubr.f32.gmra.mxu0 %v202
        %v1079 = vpop.f32.mrf.mxu0
        %v1080 = vadd.f32 %v919, %v1079
        %v1081 = vpop.f32.mrf.mxu0
        %v1082 = vadd.f32 %v921, %v1081
        %1083 = vmatprep.mubr.f32.mxu0 %v207
        %1084 = vmatmul.mubr.f32.gmra.mxu0 %v206
        %v1085 = vpop.f32.mrf.mxu0
        %v1086 = vadd.f32 %v925, %v1085
        %v1087 = vpop.f32.mrf.mxu0
        %v1088 = vadd.f32 %v927, %v1087
        %1089 = vmatprep.mubr.f32.mxu0 %v211
        %1090 = vmatmul.mubr.f32.gmra.mxu0 %v210
        %v1091 = vpop.f32.mrf.mxu0
        %v1092 = vadd.f32 %v931, %v1091
        %v1093 = vpop.f32.mrf.mxu0
        %v1094 = vadd.f32 %v933, %v1093
        %1095 = vmatprep.mubr.f32.mxu0 %v215
        %1096 = vmatmul.mubr.f32.gmra.mxu0 %v214
        %v1097 = vpop.f32.mrf.mxu0
        %v1098 = vadd.f32 %v937, %v1097
        %v1099 = vpop.f32.mrf.mxu0
        %v1100 = vadd.f32 %v939, %v1099
        %1101 = vmatprep.mubr.f32.mxu0 %v219
        %1102 = vmatmul.mubr.f32.gmra.mxu0 %v218
        %v1103 = vpop.f32.mrf.mxu0
        %v1104 = vadd.f32 %v943, %v1103
        %v1105 = vpop.f32.mrf.mxu0
        %v1106 = vadd.f32 %v945, %v1105
        %1107 = vmatprep.mubr.f32.mxu0 %v223
        %1108 = vmatmul.mubr.f32.gmra.mxu0 %v222
        %v1109 = vpop.f32.mrf.mxu0
        %v1110 = vadd.f32 %v949, %v1109
        %v1111 = vpop.f32.mrf.mxu0
        %v1112 = vadd.f32 %v951, %v1111
        %1113 = vmatprep.mubr.f32.mxu0 %v227
        %1114 = vmatmul.mubr.f32.gmra.mxu0 %v226
        %v1115 = vpop.f32.mrf.mxu0
        %v1116 = vadd.f32 %v955, %v1115
        %v1117 = vpop.f32.mrf.mxu0
        %v1118 = vadd.f32 %v957, %v1117
        %1119 = vmatprep.mubr.f32.mxu0 %v231
        %1120 = vmatmul.mubr.f32.gmra.mxu0 %v230
        %v1121 = vpop.f32.mrf.mxu0
        %v1122 = vadd.f32 %v961, %v1121
        %v1123 = vpop.f32.mrf.mxu0
        %v1124 = vadd.f32 %v963, %v1123
        %1125 = vmatprep.mubr.f32.mxu0 %v235
        %1126 = vmatmul.mubr.f32.gmra.mxu0 %v234
        %v1127 = vpop.f32.mrf.mxu0
        %v1128 = vadd.f32 %v967, %v1127
        %v1129 = vpop.f32.mrf.mxu0
        %v1130 = vadd.f32 %v969, %v1129
        %1131 = vmatprep.mubr.f32.mxu0 %v239
        %1132 = vmatmul.mubr.f32.gmra.mxu0 %v238
        %v1133 = vpop.f32.mrf.mxu0
        %v1134 = vadd.f32 %v973, %v1133
        %v1135 = vpop.f32.mrf.mxu0
        %v1136 = vadd.f32 %v975, %v1135
        %1137 = vmatprep.mubr.f32.mxu0 %v243
        %1138 = vmatmul.mubr.f32.gmra.mxu0 %v242
        %v1139 = vpop.f32.mrf.mxu0
        %v1140 = vadd.f32 %v979, %v1139
        %v1141 = vpop.f32.mrf.mxu0
        %v1142 = vadd.f32 %v981, %v1141
        %1143 = vdwg.mxu0
        %1144 = vst [vmem:[%s177] sm:$0xff] %v728
        %1145 = vst [vmem:[%s177 + $0x8] sm:$0xff] %v730
        %1146 = vst [vmem:[%s177 + $0x10] sm:$0xff] %v1050
        %1147 = vst [vmem:[%s177 + $0x18] sm:$0xff] %v1052
        %1148 = vst [vmem:[%s177 + $0x20] sm:$0xff] %v734
        %1149 = vst [vmem:[%s177 + $0x28] sm:$0xff] %v736
        %1150 = vst [vmem:[%s177 + $0x30] sm:$0xff] %v1056
        %1151 = vst [vmem:[%s177 + $0x38] sm:$0xff] %v1058
        %1152 = vst [vmem:[%s177 + $0x40] sm:$0xff] %v740
        %1153 = vst [vmem:[%s177 + $0x48] sm:$0xff] %v742
        %1154 = vst [vmem:[%s177 + $0x50] sm:$0xff] %v1062
        %1155 = vst [vmem:[%s177 + $0x58] sm:$0xff] %v1064
        %1156 = vst [vmem:[%s177 + $0x60] sm:$0xff] %v746
        %1157 = vst [vmem:[%s177 + $0x68] sm:$0xff] %v748
        %1158 = vst [vmem:[%s177 + $0x70] sm:$0xff] %v1068
        %1159 = vst [vmem:[%s177 + $0x78] sm:$0xff] %v1070
        %1160 = vst [vmem:[%s177 + $0x80] sm:$0xff] %v752
        %1161 = vst [vmem:[%s177 + $0x88] sm:$0xff] %v754
        %1162 = vst [vmem:[%s177 + $0x90] sm:$0xff] %v1074
        %1163 = vst [vmem:[%s177 + $0x98] sm:$0xff] %v1076
        %1164 = vst [vmem:[%s177 + $0xa0] sm:$0xff] %v758
        %1165 = vst [vmem:[%s177 + $0xa8] sm:$0xff] %v760
        %1166 = vst [vmem:[%s177 + $0xb0] sm:$0xff] %v1080
        %1167 = vst [vmem:[%s177 + $0xb8] sm:$0xff] %v1082
        %1168 = vst [vmem:[%s177 + $0xc0] sm:$0xff] %v764
        %1169 = vst [vmem:[%s177 + $0xc8] sm:$0xff] %v766
        %1170 = vst [vmem:[%s177 + $0xd0] sm:$0xff] %v1086
        %1171 = vst [vmem:[%s177 + $0xd8] sm:$0xff] %v1088
        %1172 = vst [vmem:[%s177 + $0xe0] sm:$0xff] %v770
        %1173 = vst [vmem:[%s177 + $0xe8] sm:$0xff] %v772
        %1174 = vst [vmem:[%s177 + $0xf0] sm:$0xff] %v1092
        %1175 = vst [vmem:[%s177 + $0xf8] sm:$0xff] %v1094
        %1176 = vst [vmem:[%s177 + $0x100] sm:$0xff] %v776
        %1177 = vst [vmem:[%s177 + $0x108] sm:$0xff] %v778
        %1178 = vst [vmem:[%s177 + $0x110] sm:$0xff] %v1098
        %1179 = vst [vmem:[%s177 + $0x118] sm:$0xff] %v1100
        %1180 = vst [vmem:[%s177 + $0x120] sm:$0xff] %v782
        %1181 = vst [vmem:[%s177 + $0x128] sm:$0xff] %v784
        %1182 = vst [vmem:[%s177 + $0x130] sm:$0xff] %v1104
        %1183 = vst [vmem:[%s177 + $0x138] sm:$0xff] %v1106
        %1184 = vst [vmem:[%s177 + $0x140] sm:$0xff] %v788
        %1185 = vst [vmem:[%s177 + $0x148] sm:$0xff] %v790
        %1186 = vst [vmem:[%s177 + $0x150] sm:$0xff] %v1110
        %1187 = vst [vmem:[%s177 + $0x158] sm:$0xff] %v1112
        %1188 = vst [vmem:[%s177 + $0x160] sm:$0xff] %v794
        %1189 = vst [vmem:[%s177 + $0x168] sm:$0xff] %v796
        %1190 = vst [vmem:[%s177 + $0x170] sm:$0xff] %v1116
        %1191 = vst [vmem:[%s177 + $0x178] sm:$0xff] %v1118
        %1192 = vst [vmem:[%s177 + $0x180] sm:$0xff] %v800
        %1193 = vst [vmem:[%s177 + $0x188] sm:$0xff] %v802
        %1194 = vst [vmem:[%s177 + $0x190] sm:$0xff] %v1122
        %1195 = vst [vmem:[%s177 + $0x198] sm:$0xff] %v1124
        %1196 = vst [vmem:[%s177 + $0x1a0] sm:$0xff] %v806
        %1197 = vst [vmem:[%s177 + $0x1a8] sm:$0xff] %v808
        %1198 = vst [vmem:[%s177 + $0x1b0] sm:$0xff] %v1128
        %1199 = vst [vmem:[%s177 + $0x1b8] sm:$0xff] %v1130
        %1200 = vst [vmem:[%s177 + $0x1c0] sm:$0xff] %v812
        %1201 = vst [vmem:[%s177 + $0x1c8] sm:$0xff] %v814
        %1202 = vst [vmem:[%s177 + $0x1d0] sm:$0xff] %v1134
        %1203 = vst [vmem:[%s177 + $0x1d8] sm:$0xff] %v1136
        %1204 = vst [vmem:[%s177 + $0x1e0] sm:$0xff] %v818
        %1205 = vst [vmem:[%s177 + $0x1e8] sm:$0xff] %v820
        %1206 = vst [vmem:[%s177 + $0x1f0] sm:$0xff] %v1140
        %1207 = vst [vmem:[%s177 + $0x1f8] sm:$0xff] %v1142
        %s1208 = sand.u32 %s75, 1
        %s1209 = scalar_lea.sflag [#allocation4], %s1208
        %s1210 = sand.u32 %s75, 1
        %s1211 = smul.addr %s1210, 512
        %s1212 = scalar_lea.vmem [#allocation7], %s1211
        // Predicated region
        $region37: #{tpu_custom_call.1} parent=27 // pred_check
          %p1213 = pneg %p85
        $region38: #{tpu_custom_call.1} parent=27 // pred_check_branch
          %1215 = sbr.rel (%p1213) target = $region40
        $region39: #{tpu_custom_call.1} parent=27 // pred_region
          %s1216 = smul.u32 16, %s20
          %s1218 = ssub.s32 8192, 8192
          %1219 = vsyncadd %s1209, %s1218
          %s1220 = smul.addr %s1216, 4
          %s1221 = smul.addr %s1220, 128
          %s1222 = scalar_lea.hbm %s2, %s1221
          %s1223 = sshll.u32 %s1212, 4
          %s1224 = int_to_ptr.vmem [resolvable:$true] %s1223
          %1229 = dma.vmem_to_hbm [thread:$0]  %s1224, 8192, %s1222, %s1209, 512, 512, 32
        $region40: #{tpu_custom_call.1} parent=27 // pred_fallthru
          _
      $region28: #{tpu_custom_call.1} parent=5 // pred_fallthru
        _
      %p1230 = scmp.le.s32.totalorder 2, %s15
      // Predicated region
      $region41: #{tpu_custom_call.1} parent=5 // pred_check
        %p1231 = pneg %p1230
      $region42: #{tpu_custom_call.1} parent=5 // pred_check_branch
        %1233 = sbr.rel (%p1231) target = $region44
      $region43: #{tpu_custom_call.1} parent=5 // pred_region
        %s1234 = ssub.s32 %s15, 2
        // Predicated region
        $region45: #{tpu_custom_call.1} parent=43 // pred_check
          %p1235 = pneg %p91
        $region46: #{tpu_custom_call.1} parent=43 // pred_check_branch
          %1237 = sbr.rel (%p1235) target = $region48
        $region47: #{tpu_custom_call.1} parent=43 // pred_region
          %s1238 = sand.u32 %s76, 1
          %s1239 = scalar_lea.sflag [#allocation4], %s1238
          %s1240 = sand.u32 %s76, 1
          %s1241 = smul.addr %s1240, 512
          %s1242 = scalar_lea.vmem [#allocation7], %s1241
          %1243 = dma.done %s1239, 8192
        $region48: #{tpu_custom_call.1} parent=43 // pred_fallthru
          _
      $region44: #{tpu_custom_call.1} parent=5 // pred_fallthru
        _
    $region6: #{tpu_custom_call.1} parent=1 // loop_footer
      %s19 = sadd.s32 1, %s15
    $region7: #{tpu_custom_call.1} parent=1 // loop_footer_branch
      %14 = sbr.rel target = $region3
    $region8: #{tpu_custom_call.1} parent=1 // loop_exit
      _
    %1244 = vsyncpa [#allocation3], 1
    %s1245 = scalar_lea.sflag [#allocation3], 1
    %1246 = vsyncpa %s1245, 1
    %1247 = vsyncpa [#allocation6], 1
    %1248 = vsyncpa [#allocation4], 1
    %s1249 = scalar_lea.sflag [#allocation4], 1
    %1250 = vsyncpa %s1249, 1

</llo_original>
